<compile_context>
chip_gen: v7x
topology: tpu7x:2x2x1
jax: 0.10.0
libtpu: 0.0.40
codegen_flags: <defaults>
</compile_context>

<pallas_src>
import functools

import jax
import jax.numpy as jnp
from jax.experimental import pallas as pl
from jax.experimental.pallas import tpu as pltpu

NUM_HEADS = 8
LN_EPS = 1e-5


def _device_defaults():
    """Per-TPU-generation (qk_tile_target, m_tile_target, vmem_limit_bytes)."""
    kind = ""
    try:
        kind = jax.devices()[0].device_kind.lower()
    except Exception:
        pass
    if "v7" in kind or "7x" in kind:
        # v7x: only 64 MiB VMEM per TensorCore -> leave headroom.
        return 256, 512, 48 * 1024 * 1024
    if "v6" in kind:
        # v6e: 2x256x256 MXU, 128 MiB physical VMEM.
        return 256, 512, 96 * 1024 * 1024
    if "v5 lite" in kind or "v5lite" in kind or "v5e" in kind:
        # v5e: 128-wide MXU already full at 128 tiles; VMEM plentiful.
        return 128, 512, 96 * 1024 * 1024
    # Unknown / older generation: conservative defaults that fit everywhere.
    return 128, 256, 48 * 1024 * 1024


def _seq_tile(n, target):
    """Largest sequence tile <= target that divides n and is a multiple of 8."""
    if n <= target:
        return n
    for t in range(target, 7, -1):
        if n % t == 0 and t % 8 == 0:
            return t
    # TODO(synk): for awkward N (no multiple-of-8 divisor <= target) pad the
    # sequence to a multiple of 128 in the wrapper (with KV masking) instead of
    # falling back to a whole-sequence tile.
    return n


# ---------------------------------------------------------------------------
# Kernel 1: LayerNorm (affine + attention scale folded into the weights) +
#           single wide QKV projection, stacked (3, 1, tm, D) output block.
# ---------------------------------------------------------------------------
def ln_qkv_kernel(x_ref, w_ref, b_ref, qkv_ref):
    D = x_ref.shape[2]
    x = x_ref[0].astype(jnp.float32)                       # (tm, D)
    mean = jnp.mean(x, axis=-1, keepdims=True)
    xc = x - mean
    var = jnp.mean(xc * xc, axis=-1, keepdims=True)
    # gamma/beta (and the 1/sqrt(dh) scale on Q) are folded into w_ref/b_ref.
    xn = (xc * jax.lax.rsqrt(var + LN_EPS)).astype(w_ref.dtype)

    qkv = (jnp.dot(xn, w_ref[...], preferred_element_type=jnp.float32)
           + b_ref[...]).astype(qkv_ref.dtype)             # (tm, 3D)
    qkv_ref[0, 0] = qkv[:, :D]
    qkv_ref[1, 0] = qkv[:, D:2 * D]
    qkv_ref[2, 0] = qkv[:, 2 * D:]


# ---------------------------------------------------------------------------
# Kernel 2: flash-style multi-head attention + fused output projection.
# ---------------------------------------------------------------------------
def flash_attn_kernel(q_ref, k_ref, v_ref, wo_ref, bo_ref, o_ref,
                      q_sc, m_sc, l_sc, acc_sc, *, num_heads):
    ki = pl.program_id(2)
    tq, D = q_ref.shape[2], q_ref.shape[3]
    tk = k_ref.shape[2]
    H = num_heads
    dh = D // H

    @pl.when(ki == 0)
    def _():
        # Q block is constant across the KV loop -> relayout to head-major once.
        q_sc[...] = q_ref[0, 0].reshape(tq, H, dh).transpose(1, 0, 2)
        m_sc[...] = jnp.full(m_sc.shape, -jnp.inf, dtype=m_sc.dtype)
        l_sc[...] = jnp.zeros(l_sc.shape, dtype=l_sc.dtype)
        acc_sc[...] = jnp.zeros(acc_sc.shape, dtype=acc_sc.dtype)

    # K/V relayout: (tk, D) -> (H, tk, dh).  (Kept in-kernel because dh < 128
    # would otherwise force non-lane-dense stores in kernel 1.)
    k = k_ref[0, 0].reshape(tk, H, dh).transpose(1, 0, 2)   # (H, tk, dh)
    v = v_ref[0, 0].reshape(tk, H, dh).transpose(1, 0, 2)   # (H, tk, dh)
    q = q_sc[...]                                           # (H, tq, dh)

    # 1/sqrt(dh) is already folded into W_q -> no post-matmul scale here.
    s = jnp.einsum('hqd,hkd->hqk', q, k,
                   preferred_element_type=jnp.float32)      # (H, tq, tk)

    # Online softmax update (f32 state in VMEM scratch, lane-dense m/l).
    m_prev = m_sc[...]                                      # (H, tq)
    m_new = jnp.maximum(m_prev, jnp.max(s, axis=-1))        # (H, tq)
    alpha = jnp.exp(m_prev - m_new)                         # (H, tq)
    p = jnp.exp(s - m_new[..., None])                       # (H, tq, tk)
    l_sc[...] = alpha * l_sc[...] + jnp.sum(p, axis=-1)
    acc_sc[...] = alpha[..., None] * acc_sc[...] + jnp.einsum(
        'hqk,hkd->hqd', p.astype(v.dtype), v,
        preferred_element_type=jnp.float32)                 # (H, tq, dh)
    m_sc[...] = m_new

    @pl.when(ki == pl.num_programs(2) - 1)
    def _():
        inv_l = pl.reciprocal(l_sc[...], approx=True)       # EUP slot, (H, tq)
        out = acc_sc[...] * inv_l[..., None]                # (H, tq, dh)
        out = out.transpose(1, 0, 2).reshape(tq, D)         # 'h q d -> q (h d)'
        y = jnp.dot(out.astype(wo_ref.dtype), wo_ref[...],
                    preferred_element_type=jnp.float32) + bo_ref[...]
        o_ref[0] = y.astype(o_ref.dtype)


# ---------------------------------------------------------------------------
# pallas_call plumbing
# ---------------------------------------------------------------------------
def _attention_impl(x, w_qkv_f, b_qkv_f, w_out, b_out, *, num_heads,
                    tm, tq, tk, vmem_limit, single_buffer_weights):
    B, N, D = x.shape
    H = num_heads
    dh = D // H

    def inv_spec(shape, index_map):
        # Grid-invariant operand: block index never changes, so double
        # buffering only wastes VMEM -> request a single buffer.
        if single_buffer_weights:
            return pl.BlockSpec(shape, index_map, pipeline_mode=pl.Buffered(1))
        return pl.BlockSpec(shape, index_map)

    # ---- Kernel 1: LayerNorm + wide QKV projection ----
    qkv = pl.pallas_call(
        ln_qkv_kernel,
        out_shape=jax.ShapeDtypeStruct((3, B, N, D), x.dtype),
        grid_spec=pltpu.PrefetchScalarGridSpec(
            num_scalar_prefetch=0,
            grid=(B, N // tm),
            in_specs=[
                pl.BlockSpec((1, tm, D), lambda b, i: (b, i, 0)),    # x
                inv_spec((D, 3 * D), lambda b, i: (0, 0)),           # W_qkv (folded)
                inv_spec((1, 3 * D), lambda b, i: (0, 0)),           # b_qkv (folded)
            ],
            out_specs=pl.BlockSpec((3, 1, tm, D), lambda b, i: (0, b, i, 0)),
        ),
        compiler_params=pltpu.CompilerParams(
            dimension_semantics=("parallel", "parallel"),
            vmem_limit_bytes=vmem_limit),
    )(x, w_qkv_f, b_qkv_f)

    # ---- Kernel 2: flash attention + fused output projection ----
    kernel = functools.partial(flash_attn_kernel, num_heads=H)
    out = pl.pallas_call(
        kernel,
        out_shape=jax.ShapeDtypeStruct((B, N, D), x.dtype),
        grid_spec=pltpu.PrefetchScalarGridSpec(
            num_scalar_prefetch=0,
            grid=(B, N // tq, N // tk),
            in_specs=[
                pl.BlockSpec((1, 1, tq, D), lambda b, qi, ki: (0, b, qi, 0)),  # Q
                pl.BlockSpec((1, 1, tk, D), lambda b, qi, ki: (1, b, ki, 0)),  # K
                pl.BlockSpec((1, 1, tk, D), lambda b, qi, ki: (2, b, ki, 0)),  # V
                inv_spec((D, D), lambda b, qi, ki: (0, 0)),                    # W_out
                inv_spec((1, D), lambda b, qi, ki: (0, 0)),                    # b_out
            ],
            out_specs=pl.BlockSpec((1, tq, D), lambda b, qi, ki: (b, qi, 0)),
            scratch_shapes=[
                pltpu.VMEM((H, tq, dh), x.dtype),       # hoisted head-major Q
                pltpu.VMEM((H, tq), jnp.float32),       # running max  m (lane-dense)
                pltpu.VMEM((H, tq), jnp.float32),       # running sum  l (lane-dense)
                pltpu.VMEM((H, tq, dh), jnp.float32),   # running numerator
            ],
        ),
        compiler_params=pltpu.CompilerParams(
            dimension_semantics=("parallel", "parallel", "arbitrary"),
            vmem_limit_bytes=vmem_limit),
    )(qkv, qkv, qkv, w_out, b_out)
    return out


def attention_forward(x, gamma, beta, w_qkv, w_out, b_out, num_heads=NUM_HEADS):
    B, N, D = x.shape
    H = num_heads
    assert D % H == 0, "dim must be evenly divisible by num_heads"
    dh = D // H
    scale = float(dh) ** -0.5

    # Fold the LayerNorm affine AND the attention scale into the QKV weights:
    #   (x_hat * g + b) @ W == x_hat @ (g[:, None] * W) + b @ W
    #   q * scale         == x_hat @ (g[:, None] * W_q * scale) + (b @ W_q) * scale
    w32 = w_qkv.astype(jnp.float32)
    g = gamma.reshape(D, 1).astype(jnp.float32)
    w_f = w32 * g                                            # (D, 3D)
    b_f = beta.reshape(1, D).astype(jnp.float32) @ w32       # (1, 3D)
    col_scale = jnp.concatenate(
        [jnp.full((D,), scale, jnp.float32), jnp.ones((2 * D,), jnp.float32)])
    w_f = (w_f * col_scale[None, :]).astype(x.dtype)
    b_f = b_f * col_scale[None, :]                           # f32 bias

    w_o = w_out.astype(x.dtype)
    b_o = b_out.reshape(1, D).astype(jnp.float32)

    qk_target, m_target, vmem_limit = _device_defaults()
    tm = _seq_tile(N, m_target)   # kernel 1 is HBM-bound: big tiles
    tq = _seq_tile(N, qk_target)
    tk = _seq_tile(N, qk_target)

    def run(single_buffer):
        return _attention_impl(
            x, w_f, b_f, w_o, b_o, num_heads=H, tm=tm, tq=tq, tk=tk,
            vmem_limit=vmem_limit, single_buffer_weights=single_buffer)

    try:
        out = run(True)
        jax.block_until_ready(out)
        return out
    except Exception:
        # Some jax versions reject single-buffered (Buffered(1)) BlockSpecs;
        # fall back to default double buffering for the invariant weights.
        return run(False)


# ---------------------------------------------------------------------------
# Pure-JAX reference mirroring the PyTorch forward.
# ---------------------------------------------------------------------------
def attention_ref(x, gamma, beta, w_qkv, w_out, b_out, num_heads=NUM_HEADS):
    B, N, D = x.shape
    H = num_heads
    dh = D // H
    mean = jnp.mean(x, axis=-1, keepdims=True)
    var = jnp.mean((x - mean) ** 2, axis=-1, keepdims=True)
    xn = (x - mean) / jnp.sqrt(var + LN_EPS) * gamma.reshape(1, 1, D) \
        + beta.reshape(1, 1, D)
    qkv = xn @ w_qkv
    q, k, v = jnp.split(qkv, 3, axis=-1)

    def to_heads(t):
        return t.reshape(B, N, H, dh).transpose(0, 2, 1, 3)   # b h n d

    q, k, v = map(to_heads, (q, k, v))
    scores = jnp.einsum('bhid,bhjd->bhij', q, k) * (dh ** -0.5)
    attn = jax.nn.softmax(scores, axis=-1)
    out = jnp.einsum('bhij,bhjd->bhid', attn, v)
    out = out.transpose(0, 2, 1, 3).reshape(B, N, D)
    return out @ w_out + b_out.reshape(1, D)


if __name__ == "__main__":
    B, N, D = 2, 8, 32  # dim=32, num_heads=8 -> dim_head=4

    key = jax.random.PRNGKey(0)
    k_x, k_qkv, k_wo, k_bo, k_g, k_b = jax.random.split(key, 6)

    x = jax.random.normal(k_x, (B, N, D), dtype=jnp.float32)
    # Synthetic deterministic parameters (shapes from the module __init__).
    w_qkv = jax.random.normal(k_qkv, (D, 3 * D), dtype=jnp.float32) * (D ** -0.5)
    w_out = jax.random.normal(k_wo, (D, D), dtype=jnp.float32) * (D ** -0.5)
    b_out = jax.random.normal(k_bo, (1, D), dtype=jnp.float32) * 0.1
    gamma = jnp.ones((1, D), dtype=jnp.float32) + 0.1 * jax.random.normal(k_g, (1, D))
    beta = 0.1 * jax.random.normal(k_b, (1, D), dtype=jnp.float32)

    out = attention_forward(x, gamma, beta, w_qkv, w_out, b_out)
    out = jax.block_until_ready(out)

    ref = attention_ref(x, gamma, beta, w_qkv, w_out, b_out)
    # Slightly relaxed tolerance: EUP approximate reciprocal in the softmax.
    max_err = jnp.max(jnp.abs(out - ref))
    assert jnp.allclose(out, ref, atol=2e-3, rtol=2e-3), \
        f"mismatch vs reference, max abs err = {max_err}"

    print("KERNEL_OK")
</pallas_src>

<mosaic_0001>
module attributes {stable_mosaic.version = 11 : i64} {
  func.func @ln_qkv_kernel(%arg0: i32, %arg1: i32, %arg2: memref<1x8x32xf32, #tpu.memory_space<vmem>>, %arg3: memref<32x96xf32, #tpu.memory_space<vmem>>, %arg4: memref<1x96xf32, #tpu.memory_space<vmem>>, %arg5: memref<3x1x8x32xf32, #tpu.memory_space<vmem>>) attributes {dimension_semantics = [#tpu.dimension_semantics<parallel>, #tpu.dimension_semantics<parallel>], iteration_bounds = array<i64: 2, 1>, scalar_prefetch = 0 : i64, scratch_operands = 0 : i64, tpu.core_type = #tpu.core_type<tc>, window_params = [{transform_indices = @transform_0, window_bounds = array<i64: 1, 8, 32>}, {pipeline_mode = #tpu.pipeline_mode<synchronous>, transform_indices = @transform_1, window_bounds = array<i64: 32, 96>}, {pipeline_mode = #tpu.pipeline_mode<synchronous>, transform_indices = @transform_2, window_bounds = array<i64: 1, 96>}, {transform_indices = @transform_3, window_bounds = array<i64: 3, 1, 8, 32>}]} {
    %c0 = arith.constant 0 : index
    %c0_0 = arith.constant 0 : index
    %c0_1 = arith.constant 0 : index
    %0 = vector.load %arg2[%c0, %c0_0, %c0_1] : memref<1x8x32xf32, #tpu.memory_space<vmem>>, vector<1x8x32xf32>
    %1 = vector.shape_cast %0 : vector<1x8x32xf32> to vector<8x32xf32>
    %cst = arith.constant dense<0.000000e+00> : vector<8xf32>
    %2 = vector.multi_reduction <add>, %1, %cst [1] : vector<8x32xf32> to vector<8xf32>
    %3 = vector.shape_cast %2 : vector<8xf32> to vector<8x1xf32>
    %cst_2 = arith.constant 3.200000e+01 : f32
    %4 = vector.broadcast %cst_2 : f32 to vector<8x1xf32>
    %5 = arith.divf %3, %4 : vector<8x1xf32>
    %6 = vector.broadcast %5 : vector<8x1xf32> to vector<8x32xf32>
    %7 = arith.subf %1, %6 : vector<8x32xf32>
    %8 = arith.mulf %7, %7 : vector<8x32xf32>
    %cst_3 = arith.constant dense<0.000000e+00> : vector<8xf32>
    %9 = vector.multi_reduction <add>, %8, %cst_3 [1] : vector<8x32xf32> to vector<8xf32>
    %10 = vector.shape_cast %9 : vector<8xf32> to vector<8x1xf32>
    %cst_4 = arith.constant 3.200000e+01 : f32
    %11 = vector.broadcast %cst_4 : f32 to vector<8x1xf32>
    %12 = arith.divf %10, %11 : vector<8x1xf32>
    %cst_5 = arith.constant 9.99999974E-6 : f32
    %13 = vector.broadcast %cst_5 : f32 to vector<8x1xf32>
    %14 = arith.addf %12, %13 : vector<8x1xf32>
    %15 = math.rsqrt %14 : vector<8x1xf32>
    %16 = vector.broadcast %15 : vector<8x1xf32> to vector<8x32xf32>
    %17 = arith.mulf %7, %16 : vector<8x32xf32>
    %c0_6 = arith.constant 0 : index
    %c0_7 = arith.constant 0 : index
    %18 = vector.load %arg3[%c0_6, %c0_7] : memref<32x96xf32, #tpu.memory_space<vmem>>, vector<32x96xf32>
    %cst_8 = arith.constant dense<0.000000e+00> : vector<8x96xf32>
    %19 = tpu.matmul %17, %18, %cst_8 {dimension_numbers = #tpu.dot_dimension_numbers<[1], [0], [0], [1], [0, 0, 1, 1], [], []>} : vector<8x32xf32>, vector<32x96xf32>, vector<8x96xf32> -> vector<8x96xf32>
    %c0_9 = arith.constant 0 : index
    %c0_10 = arith.constant 0 : index
    %20 = vector.load %arg4[%c0_9, %c0_10] : memref<1x96xf32, #tpu.memory_space<vmem>>, vector<1x96xf32>
    %21 = vector.broadcast %20 : vector<1x96xf32> to vector<8x96xf32>
    %22 = arith.addf %19, %21 : vector<8x96xf32>
    %23 = vector.extract_strided_slice %22 {offsets = [0, 0], sizes = [8, 32], strides = [1, 1]} : vector<8x96xf32> to vector<8x32xf32>
    %c0_11 = arith.constant 0 : index
    %c0_12 = arith.constant 0 : index
    %c0_13 = arith.constant 0 : index
    %c0_14 = arith.constant 0 : index
    %24 = vector.load %arg5[%c0_11, %c0_12, %c0_13, %c0_14] : memref<3x1x8x32xf32, #tpu.memory_space<vmem>>, vector<1x1x8x32xf32>
    %25 = vector.shape_cast %24 : vector<1x1x8x32xf32> to vector<8x32xf32>
    %26 = vector.shape_cast %23 : vector<8x32xf32> to vector<1x1x8x32xf32>
    tpu.vector_store %arg5[%c0_11, %c0_12, %c0_13, %c0_14], %26 {strides = array<i32>} : memref<3x1x8x32xf32, #tpu.memory_space<vmem>>, vector<1x1x8x32xf32>,
    %27 = vector.extract_strided_slice %22 {offsets = [0, 32], sizes = [8, 32], strides = [1, 1]} : vector<8x96xf32> to vector<8x32xf32>
    %c1 = arith.constant 1 : index
    %c0_15 = arith.constant 0 : index
    %c0_16 = arith.constant 0 : index
    %c0_17 = arith.constant 0 : index
    %28 = vector.load %arg5[%c1, %c0_15, %c0_16, %c0_17] : memref<3x1x8x32xf32, #tpu.memory_space<vmem>>, vector<1x1x8x32xf32>
    %29 = vector.shape_cast %28 : vector<1x1x8x32xf32> to vector<8x32xf32>
    %30 = vector.shape_cast %27 : vector<8x32xf32> to vector<1x1x8x32xf32>
    tpu.vector_store %arg5[%c1, %c0_15, %c0_16, %c0_17], %30 {strides = array<i32>} : memref<3x1x8x32xf32, #tpu.memory_space<vmem>>, vector<1x1x8x32xf32>,
    %31 = vector.extract_strided_slice %22 {offsets = [0, 64], sizes = [8, 32], strides = [1, 1]} : vector<8x96xf32> to vector<8x32xf32>
    %c2 = arith.constant 2 : index
    %c0_18 = arith.constant 0 : index
    %c0_19 = arith.constant 0 : index
    %c0_20 = arith.constant 0 : index
    %32 = vector.load %arg5[%c2, %c0_18, %c0_19, %c0_20] : memref<3x1x8x32xf32, #tpu.memory_space<vmem>>, vector<1x1x8x32xf32>
    %33 = vector.shape_cast %32 : vector<1x1x8x32xf32> to vector<8x32xf32>
    %34 = vector.shape_cast %31 : vector<8x32xf32> to vector<1x1x8x32xf32>
    tpu.vector_store %arg5[%c2, %c0_18, %c0_19, %c0_20], %34 {strides = array<i32>} : memref<3x1x8x32xf32, #tpu.memory_space<vmem>>, vector<1x1x8x32xf32>,
    return
  }
  func.func @transform_0(%arg0: i32, %arg1: i32) -> (i32, i32, i32) {
    %c0_i32 = arith.constant 0 : i32
    %c0_i32_0 = arith.constant 0 : i32
    return %arg0, %arg1, %c0_i32 : i32, i32, i32
  }
  func.func @transform_1(%arg0: i32, %arg1: i32) -> (i32, i32) {
    %c0_i32 = arith.constant 0 : i32
    %c0_i32_0 = arith.constant 0 : i32
    %c0_i32_1 = arith.constant 0 : i32
    return %c0_i32, %c0_i32_0 : i32, i32
  }
  func.func @transform_2(%arg0: i32, %arg1: i32) -> (i32, i32) {
    %c0_i32 = arith.constant 0 : i32
    %c0_i32_0 = arith.constant 0 : i32
    %c0_i32_1 = arith.constant 0 : i32
    return %c0_i32, %c0_i32_0 : i32, i32
  }
  func.func @transform_3(%arg0: i32, %arg1: i32) -> (i32, i32, i32, i32) {
    %c0_i32 = arith.constant 0 : i32
    %c0_i32_0 = arith.constant 0 : i32
    %c0_i32_1 = arith.constant 0 : i32
    return %c0_i32, %arg0, %arg1, %c0_i32_0 : i32, i32, i32, i32
  }
}

module attributes {stable_mosaic.version = 11 : i64} {
  func.func @ln_qkv_kernel(%arg0: i32, %arg1: i32, %arg2: memref<1x8x32xf32, #tpu.memory_space<vmem>>, %arg3: memref<32x96xf32, #tpu.memory_space<vmem>>, %arg4: memref<1x96xf32, #tpu.memory_space<vmem>>, %arg5: memref<3x1x8x32xf32, #tpu.memory_space<vmem>>) attributes {dimension_semantics = [#tpu.dimension_semantics<parallel>, #tpu.dimension_semantics<parallel>], iteration_bounds = array<i64: 2, 1>, scalar_prefetch = 0 : i64, scratch_operands = 0 : i64, tpu.core_type = #tpu.core_type<tc>, window_params = [{transform_indices = @transform_0, window_bounds = array<i64: 1, 8, 32>}, {pipeline_mode = #tpu.pipeline_mode<synchronous>, transform_indices = @transform_1, window_bounds = array<i64: 32, 96>}, {pipeline_mode = #tpu.pipeline_mode<synchronous>, transform_indices = @transform_2, window_bounds = array<i64: 1, 96>}, {transform_indices = @transform_3, window_bounds = array<i64: 3, 1, 8, 32>}]} {
    %c0 = arith.constant 0 : index
    %c0_0 = arith.constant 0 : index
    %c0_1 = arith.constant 0 : index
    %0 = vector.load %arg2[%c0, %c0_0, %c0_1] : memref<1x8x32xf32, #tpu.memory_space<vmem>>, vector<1x8x32xf32>
    %1 = vector.shape_cast %0 : vector<1x8x32xf32> to vector<8x32xf32>
    %cst = arith.constant dense<0.000000e+00> : vector<8xf32>
    %2 = vector.multi_reduction <add>, %1, %cst [1] : vector<8x32xf32> to vector<8xf32>
    %3 = vector.shape_cast %2 : vector<8xf32> to vector<8x1xf32>
    %cst_2 = arith.constant 3.200000e+01 : f32
    %4 = vector.broadcast %cst_2 : f32 to vector<8x1xf32>
    %5 = arith.divf %3, %4 : vector<8x1xf32>
    %6 = vector.broadcast %5 : vector<8x1xf32> to vector<8x32xf32>
    %7 = arith.subf %1, %6 : vector<8x32xf32>
    %8 = arith.mulf %7, %7 : vector<8x32xf32>
    %cst_3 = arith.constant dense<0.000000e+00> : vector<8xf32>
    %9 = vector.multi_reduction <add>, %8, %cst_3 [1] : vector<8x32xf32> to vector<8xf32>
    %10 = vector.shape_cast %9 : vector<8xf32> to vector<8x1xf32>
    %cst_4 = arith.constant 3.200000e+01 : f32
    %11 = vector.broadcast %cst_4 : f32 to vector<8x1xf32>
    %12 = arith.divf %10, %11 : vector<8x1xf32>
    %cst_5 = arith.constant 9.99999974E-6 : f32
    %13 = vector.broadcast %cst_5 : f32 to vector<8x1xf32>
    %14 = arith.addf %12, %13 : vector<8x1xf32>
    %15 = math.rsqrt %14 : vector<8x1xf32>
    %16 = vector.broadcast %15 : vector<8x1xf32> to vector<8x32xf32>
    %17 = arith.mulf %7, %16 : vector<8x32xf32>
    %c0_6 = arith.constant 0 : index
    %c0_7 = arith.constant 0 : index
    %18 = vector.load %arg3[%c0_6, %c0_7] : memref<32x96xf32, #tpu.memory_space<vmem>>, vector<32x96xf32>
    %cst_8 = arith.constant dense<0.000000e+00> : vector<8x96xf32>
    %19 = tpu.matmul %17, %18, %cst_8 {dimension_numbers = #tpu.dot_dimension_numbers<[1], [0], [0], [1], [0, 0, 1, 1], [], []>} : vector<8x32xf32>, vector<32x96xf32>, vector<8x96xf32> -> vector<8x96xf32>
    %c0_9 = arith.constant 0 : index
    %c0_10 = arith.constant 0 : index
    %20 = vector.load %arg4[%c0_9, %c0_10] : memref<1x96xf32, #tpu.memory_space<vmem>>, vector<1x96xf32>
    %21 = vector.broadcast %20 : vector<1x96xf32> to vector<8x96xf32>
    %22 = arith.addf %19, %21 : vector<8x96xf32>
    %23 = vector.extract_strided_slice %22 {offsets = [0, 0], sizes = [8, 32], strides = [1, 1]} : vector<8x96xf32> to vector<8x32xf32>
    %c0_11 = arith.constant 0 : index
    %c0_12 = arith.constant 0 : index
    %c0_13 = arith.constant 0 : index
    %c0_14 = arith.constant 0 : index
    %24 = vector.load %arg5[%c0_11, %c0_12, %c0_13, %c0_14] : memref<3x1x8x32xf32, #tpu.memory_space<vmem>>, vector<1x1x8x32xf32>
    %25 = vector.shape_cast %24 : vector<1x1x8x32xf32> to vector<8x32xf32>
    %26 = vector.shape_cast %23 : vector<8x32xf32> to vector<1x1x8x32xf32>
    tpu.vector_store %arg5[%c0_11, %c0_12, %c0_13, %c0_14], %26 {strides = array<i32>} : memref<3x1x8x32xf32, #tpu.memory_space<vmem>>, vector<1x1x8x32xf32>,
    %27 = vector.extract_strided_slice %22 {offsets = [0, 32], sizes = [8, 32], strides = [1, 1]} : vector<8x96xf32> to vector<8x32xf32>
    %c1 = arith.constant 1 : index
    %c0_15 = arith.constant 0 : index
    %c0_16 = arith.constant 0 : index
    %c0_17 = arith.constant 0 : index
    %28 = vector.load %arg5[%c1, %c0_15, %c0_16, %c0_17] : memref<3x1x8x32xf32, #tpu.memory_space<vmem>>, vector<1x1x8x32xf32>
    %29 = vector.shape_cast %28 : vector<1x1x8x32xf32> to vector<8x32xf32>
    %30 = vector.shape_cast %27 : vector<8x32xf32> to vector<1x1x8x32xf32>
    tpu.vector_store %arg5[%c1, %c0_15, %c0_16, %c0_17], %30 {strides = array<i32>} : memref<3x1x8x32xf32, #tpu.memory_space<vmem>>, vector<1x1x8x32xf32>,
    %31 = vector.extract_strided_slice %22 {offsets = [0, 64], sizes = [8, 32], strides = [1, 1]} : vector<8x96xf32> to vector<8x32xf32>
    %c2 = arith.constant 2 : index
    %c0_18 = arith.constant 0 : index
    %c0_19 = arith.constant 0 : index
    %c0_20 = arith.constant 0 : index
    %32 = vector.load %arg5[%c2, %c0_18, %c0_19, %c0_20] : memref<3x1x8x32xf32, #tpu.memory_space<vmem>>, vector<1x1x8x32xf32>
    %33 = vector.shape_cast %32 : vector<1x1x8x32xf32> to vector<8x32xf32>
    %34 = vector.shape_cast %31 : vector<8x32xf32> to vector<1x1x8x32xf32>
    tpu.vector_store %arg5[%c2, %c0_18, %c0_19, %c0_20], %34 {strides = array<i32>} : memref<3x1x8x32xf32, #tpu.memory_space<vmem>>, vector<1x1x8x32xf32>,
    return
  }
  func.func @transform_0(%arg0: i32, %arg1: i32) -> (i32, i32, i32) {
    %c0_i32 = arith.constant 0 : i32
    %c0_i32_0 = arith.constant 0 : i32
    return %arg0, %arg1, %c0_i32 : i32, i32, i32
  }
  func.func @transform_1(%arg0: i32, %arg1: i32) -> (i32, i32) {
    %c0_i32 = arith.constant 0 : i32
    %c0_i32_0 = arith.constant 0 : i32
    %c0_i32_1 = arith.constant 0 : i32
    return %c0_i32, %c0_i32_0 : i32, i32
  }
  func.func @transform_2(%arg0: i32, %arg1: i32) -> (i32, i32) {
    %c0_i32 = arith.constant 0 : i32
    %c0_i32_0 = arith.constant 0 : i32
    %c0_i32_1 = arith.constant 0 : i32
    return %c0_i32, %c0_i32_0 : i32, i32
  }
  func.func @transform_3(%arg0: i32, %arg1: i32) -> (i32, i32, i32, i32) {
    %c0_i32 = arith.constant 0 : i32
    %c0_i32_0 = arith.constant 0 : i32
    %c0_i32_1 = arith.constant 0 : i32
    return %c0_i32, %arg0, %arg1, %c0_i32_0 : i32, i32, i32, i32
  }
}

</mosaic_0001>

<llo_original>
// kernel: tpu_custom_call.1
$region0: #{tpu_custom_call.1}
  #allocation0 [shape = 'u32[]', space=smem, size = 0x4, offset = 0x4, fixed_abs, tag = 'smem constant byte address 0x4 - core index']
  #allocation1 [shape = 'u32[144,128]{1,0:T(1,128)}', space=vmem, size = 0x12000, scoped, tag = 'internal scratch']
  %s0 = inlined_call_operand.hbm [shape: f32[2,8,32], index: 0, kind: input, shape index: {}]
  %s1 = inlined_call_operand.hbm [shape: f32[32,96], index: 1, kind: input, shape index: {}]
  %s2 = inlined_call_operand.vmem [shape: f32[1,96], index: 2, kind: input, shape index: {}]
  %s3 = inlined_call_operand.hbm [shape: f32[3,2,8,32], index: 3, kind: output, shape index: {}]
  %s4 = sld [smem:[#allocation0]]
  $region53: #{tpu_custom_call.1} parent=0
    _
  %s6 = ssub.s32 1, %s4
  %s7 = scalar_select 0, %s6, %s4
  $region1: #{tpu_custom_call.1} parent=0
    #allocation2 [shape = 'u8[8192]{0}', space=vmem, size = 0x2000, scoped, tag = 'input window, operand 0']
    #allocation3 [shape = 's32[2]{0}', space=sflag, size = 0x8, scoped, tag = 'scoped memory for tpu_custom_call.1']
    #allocation4 [shape = 's32[2]{0}', space=sflag, size = 0x8, scoped, tag = 'scoped memory for tpu_custom_call.1']
    #allocation5 [shape = 'u8[16384]{0}', space=vmem, size = 0x4000, scoped, tag = 'input window, operand 1, single buffered']
    #allocation6 [shape = 's32[1]{0}', space=sflag, size = 0x4, scoped, tag = 'scoped memory for tpu_custom_call.1']
    #allocation7 [shape = 'u8[24576]{0}', space=vmem, size = 0x6000, scoped, tag = 'output window, operand 0']
    %8 = vsyncpa [#allocation3], 0
    %s9 = scalar_lea.sflag [#allocation3], 1
    %10 = vsyncpa %s9, 0
    %11 = vsyncpa [#allocation6], 0
    %12 = vsyncpa [#allocation4], 0
    %s13 = scalar_lea.sflag [#allocation4], 1
    %14 = vsyncpa %s13, 0
    loop: start=0, step=1, limit=4
    $region2: #{tpu_custom_call.1} parent=1 // loop_pre_header
      _
    $region3: #{tpu_custom_call.1} parent=1 // loop_header
      %s16 = sphi 0, %s20
      %p17 = scmp.ge.s32.totalorder %s16, 4
      %s23 = sphi 0, %s35
      %s24 = sphi 0, %s31
      %s25 = sphi 0, %s23
      %s26 = sphi 0, %s24
      %s27 = sphi 0, %s25
      %s28 = sphi 0, %s26
      %s40 = sphi 0, %s42
      %s43 = sphi 0, %s40
      %s44 = sphi 0, %s43
      %s60 = sphi 0, %s44
      %s64 = sphi 0, %s64
      %s66 = sphi 0, %s64
      %s67 = sphi 0, %s66
      %s81 = sphi 0, %s67
      %s85 = sphi 0, %s85
      %s87 = sphi 0, %s85
      %s88 = sphi 0, %s87
      %s102 = sphi 0, %s88
      %s110 = sphi 0, %s112
      %s113 = sphi 0, %s110
      %s114 = sphi 0, %s113
      %s130 = sphi 0, %s114
    $region4: #{tpu_custom_call.1} parent=1 // loop_header_branch
      %19 = sbr.rel (%p17) target = $region8
    $region5: #{tpu_custom_call.1} parent=1 // loop_body
      %s21 = ssub.s32 %s16, 1
      %s22 = ssub.s32 %s16, 2
      %s29 = sadd.s32 1, %s24
      %p30 = scmp.ge.s32.totalorder %s29, 1
      %s31 = scalar_select %p30, 0, %s29
      %s32 = sadd.s32 1, %s23
      %s33 = scalar_select %p30, %s32, %s23
      %p34 = scmp.ge.s32.totalorder %s33, 2
      %s35 = scalar_select %p34, 0, %s33
      %s36 = ssub.s32 %s23, %s35
      %s37 = ssub.s32 %s24, %s31
      %s38 = sor.u32 %s36, %s37
      %p39 = scmp.eq.s32.totalorder %s38, 0
      %s41 = sadd.s32 %s40, 1
      %s42 = scalar_select %p39, %s40, %s41
      %p45 = pneg %p39
      %p46 = scmp.eq.s32.totalorder %s16, 1
      %p47 = por %p45, %p46
      %p48 = scmp.ne.s32.totalorder %s40, %s43
      %p49 = scmp.eq.s32.totalorder %s16, 0
      %p50 = por %p48, %p49
      %p51 = scmp.ne.s32.totalorder %s40, %s43
      %p52 = scmp.eq.s32.totalorder %s21, 1
      %p53 = por %p51, %p52
      %p54 = scmp.ne.s32.totalorder %s43, %s44
      %p55 = scmp.eq.s32.totalorder %s21, 0
      %p56 = por %p54, %p55
      %p57 = scmp.ne.s32.totalorder %s43, %s44
      %p58 = scmp.eq.s32.totalorder %s22, 1
      %p59 = por %p57, %p58
      %p61 = scmp.ne.s32.totalorder %s44, %s60
      %p62 = scmp.eq.s32.totalorder %s22, 0
      %p63 = por %p61, %p62
      %s65 = sadd.s32 %s64, 1
      %p68 = scmp.eq.s32.totalorder %s16, 1
      %p69 = scmp.ne.s32.totalorder %s64, %s66
      %p70 = scmp.eq.s32.totalorder %s16, 0
      %p71 = por %p69, %p70
      %p72 = scmp.ne.s32.totalorder %s64, %s66
      %p73 = scmp.eq.s32.totalorder %s21, 1
      %p74 = por %p72, %p73
      %p75 = scmp.ne.s32.totalorder %s66, %s67
      %p76 = scmp.eq.s32.totalorder %s21, 0
      %p77 = por %p75, %p76
      %p78 = scmp.ne.s32.totalorder %s66, %s67
      %p79 = scmp.eq.s32.totalorder %s22, 1
      %p80 = por %p78, %p79
      %p82 = scmp.ne.s32.totalorder %s67, %s81
      %p83 = scmp.eq.s32.totalorder %s22, 0
      %p84 = por %p82, %p83
      %s86 = sadd.s32 %s85, 1
      %p89 = scmp.eq.s32.totalorder %s16, 1
      %p90 = scmp.ne.s32.totalorder %s85, %s87
      %p91 = scmp.eq.s32.totalorder %s16, 0
      %p92 = por %p90, %p91
      %p93 = scmp.ne.s32.totalorder %s85, %s87
      %p94 = scmp.eq.s32.totalorder %s21, 1
      %p95 = por %p93, %p94
      %p96 = scmp.ne.s32.totalorder %s87, %s88
      %p97 = scmp.eq.s32.totalorder %s21, 0
      %p98 = por %p96, %p97
      %p99 = scmp.ne.s32.totalorder %s87, %s88
      %p100 = scmp.eq.s32.totalorder %s22, 1
      %p101 = por %p99, %p100
      %p103 = scmp.ne.s32.totalorder %s88, %s102
      %p104 = scmp.eq.s32.totalorder %s22, 0
      %p105 = por %p103, %p104
      %s106 = ssub.s32 %s23, %s35
      %s107 = ssub.s32 %s24, %s31
      %s108 = sor.u32 %s106, %s107
      %p109 = scmp.eq.s32.totalorder %s108, 0
      %s111 = sadd.s32 %s110, 1
      %s112 = scalar_select %p109, %s110, %s111
      %p115 = pneg %p109
      %p116 = scmp.eq.s32.totalorder %s16, 1
      %p117 = por %p115, %p116
      %p118 = scmp.ne.s32.totalorder %s110, %s113
      %p119 = scmp.eq.s32.totalorder %s16, 0
      %p120 = por %p118, %p119
      %p121 = scmp.ne.s32.totalorder %s110, %s113
      %p122 = scmp.eq.s32.totalorder %s21, 1
      %p123 = por %p121, %p122
      %p124 = scmp.ne.s32.totalorder %s113, %s114
      %p125 = scmp.eq.s32.totalorder %s21, 0
      %p126 = por %p124, %p125
      %p127 = scmp.ne.s32.totalorder %s113, %s114
      %p128 = scmp.eq.s32.totalorder %s22, 1
      %p129 = por %p127, %p128
      %p131 = scmp.ne.s32.totalorder %s114, %s130
      %p132 = scmp.eq.s32.totalorder %s22, 0
      %p133 = por %p131, %p132
      %p134 = scmp.le.s32.totalorder 1, %s16
      %p135 = scmp.lt.s32.totalorder %s16, 3
      %p136 = pnand %p134, %p135
      %p137 = pneg %p136
      // Predicated region
      $region9: #{tpu_custom_call.1} parent=5 // pred_check
        _
      $region10: #{tpu_custom_call.1} parent=5 // pred_check_branch
        %139 = sbr.rel (%p136) target = $region12
      $region11: #{tpu_custom_call.1} parent=5 // pred_region
        %s140 = ssub.s32 %s16, 1
        // Predicated region
        $region13: #{tpu_custom_call.1} parent=11 // pred_check
          %p141 = pneg %p77
        $region14: #{tpu_custom_call.1} parent=11 // pred_check_branch
          %143 = sbr.rel (%p141) target = $region16
        $region15: #{tpu_custom_call.1} parent=11 // pred_region
          %s145 = ssub.s32 512, 512
          %146 = vsyncadd [#allocation6], %s145
          %s147 = sshll.u32 [#allocation5], 4
          %s148 = int_to_ptr.vmem [resolvable:$true] %s147
          %153 = dma.hbm_to_vmem [thread:$0]  %s1, 512, %s148, [#allocation6], 128, 128, 8
        $region16: #{tpu_custom_call.1} parent=11 // pred_fallthru
          _
        // Predicated region
        $region17: #{tpu_custom_call.1} parent=11 // pred_check
          %p154 = pneg %p98
        $region18: #{tpu_custom_call.1} parent=11 // pred_check_branch
          %156 = sbr.rel (%p154) target = $region20
        $region19: #{tpu_custom_call.1} parent=11 // pred_region
          _
        $region20: #{tpu_custom_call.1} parent=11 // pred_fallthru
          _
      $region12: #{tpu_custom_call.1} parent=5 // pred_fallthru
        _
      %p157 = scmp.lt.s32.totalorder %s16, 2
      // Predicated region
      $region21: #{tpu_custom_call.1} parent=5 // pred_check
        %p158 = pneg %p157
      $region22: #{tpu_custom_call.1} parent=5 // pred_check_branch
        %160 = sbr.rel (%p158) target = $region24
      $region23: #{tpu_custom_call.1} parent=5 // pred_region
        // Predicated region
        $region25: #{tpu_custom_call.1} parent=23 // pred_check
          %p161 = pneg %p50
        $region26: #{tpu_custom_call.1} parent=23 // pred_check_branch
          %163 = sbr.rel (%p161) target = $region28
        $region27: #{tpu_custom_call.1} parent=23 // pred_region
          %s164 = sand.u32 %s40, 1
          %s165 = scalar_lea.sflag [#allocation3], %s164
          %s166 = sand.u32 %s40, 1
          %s167 = smul.addr %s166, 8
          %s168 = scalar_lea.vmem [#allocation2], %s167
          %s170 = ssub.s32 128, 128
          %171 = vsyncadd %s165, %s170
          %s172 = sadd.s32 %s24, %s23
          %s173 = smul.addr %s172, 128
          %s174 = scalar_lea.hbm %s0, %s173
          %s176 = sshll.u32 %s168, 4
          %s177 = int_to_ptr.vmem [resolvable:$true] %s176
          %179 = dma.hbm_to_vmem [thread:$0]  %s174, 128, %s177, %s165
        $region28: #{tpu_custom_call.1} parent=23 // pred_fallthru
          _
      $region24: #{tpu_custom_call.1} parent=5 // pred_fallthru
        _
      %p180 = scmp.le.s32.totalorder 1, %s16
      %p181 = scmp.lt.s32.totalorder %s16, 3
      %p182 = pnand %p180, %p181
      %p183 = pneg %p182
      // Predicated region
      $region29: #{tpu_custom_call.1} parent=5 // pred_check
        _
      $region30: #{tpu_custom_call.1} parent=5 // pred_check_branch
        %185 = sbr.rel (%p182) target = $region32
      $region31: #{tpu_custom_call.1} parent=5 // pred_region
        %s186 = ssub.s32 %s16, 1
        %s187 = sand.u32 %s43, 1
        %s188 = scalar_lea.sflag [#allocation3], %s187
        %s189 = sand.u32 %s43, 1
        %s190 = smul.addr %s189, 8
        %s191 = scalar_lea.vmem [#allocation2], %s190
        // Predicated region
        $region33: #{tpu_custom_call.1} parent=31 // pred_check
          %p192 = pneg %p56
        $region34: #{tpu_custom_call.1} parent=31 // pred_check_branch
          %194 = sbr.rel (%p192) target = $region36
        $region35: #{tpu_custom_call.1} parent=31 // pred_region
          %195 = dma.done %s188, 128
        $region36: #{tpu_custom_call.1} parent=31 // pred_fallthru
          _
        // Predicated region
        $region37: #{tpu_custom_call.1} parent=31 // pred_check
          %p196 = pneg %p77
        $region38: #{tpu_custom_call.1} parent=31 // pred_check_branch
          %198 = sbr.rel (%p196) target = $region40
        $region39: #{tpu_custom_call.1} parent=31 // pred_region
          %199 = dma.done [#allocation6], 512
        $region40: #{tpu_custom_call.1} parent=31 // pred_fallthru
          _
        %s200 = sand.u32 %s43, 1
        %s201 = scalar_lea.sflag [#allocation3], %s200
        %s202 = sand.u32 %s43, 1
        %s203 = smul.addr %s202, 8
        %s204 = scalar_lea.vmem [#allocation2], %s203
        %p205 = pneg %p56
        %p206 = pneg %p53
        %p207 = pneg %p77
        %p208 = pneg %p74
        %p209 = pneg %p98
        %p210 = pneg %p95
        %p211 = pneg %p126
        %p212 = pneg %p123
        %s213 = sand.u32 %s113, 1
        %s214 = scalar_lea.sflag [#allocation4], %s213
        %s215 = sand.u32 %s113, 1
        %s216 = smul.addr %s215, 24
        %s217 = scalar_lea.vmem [#allocation7], %s216
        %v218 = vld [vmem:[%s191] sm:$0xff]
        %vm219 = vcmask 261120
        %v220 = vsel %vm219, %v218, 0.0
        %221 = vadd.xlane.f32.xlu0 %v220
        %v222 = vpop.xlane.xlu0 %221
        %v223 = vrcp.pop 32.0
        %v224 = vmul.f32 %v222, %v223
        %v225 = vsub.f32 %v218, %v224
        %v226 = vmul.f32 %v225, %v225
        %v227 = vsel %vm219, %v226, 0.0
        %228 = vadd.xlane.f32.xlu0 %v227
        %v229 = vpop.xlane.xlu0 %228
        %v230 = vmul.f32 %v229, %v223
        %v231 = vadd.f32 %v230, 1e-05
        %v232 = vrsqrt.pop %v231
        %v233 = vmul.f32 %v225, %v232
        %v234 = vld [vmem:[#allocation5] sm:$0xff]
        %v235 = vld [vmem:[#allocation5 + $0x8] sm:$0xff]
        %v236 = vld [vmem:[#allocation5 + $0x10] sm:$0xff]
        %v237 = vld [vmem:[#allocation5 + $0x18] sm:$0xff]
        %v238 = vld [vmem:[%s2] sm:$0x1]
        %v240 = vlaneseq
        %v241 = vshrl.u32 %v240, 7
        %v242 = vsub.s32 0, %v241
        %v243 = vrot.slane %v238, %v242
        %v246 = vsel %vm219, %v233, 0
        %248 = vmatprep.subr.mxu0 0.0
        %249 = vmatpush1.msra.mxu0 %v234
        %250 = vmatprep.subr.mxu0 0.0
        %251 = vmatpush1.msra.mxu0 %v235
        %252 = vmatprep.subr.mxu0 0.0
        %253 = vmatpush1.msra.mxu0 %v236
        %254 = vmatprep.subr.mxu0 0.0
        %255 = vmatpush1.msra.mxu0 %v237
        %256 = vmatprep.subr.mxu0 0.0
        %257 = vmatpush1.msra.mxu0 0.0
        %258 = vmatprep.subr.mxu0 0.0
        %259 = vmatpush1.msra.mxu0 0.0
        %260 = vmatprep.subr.mxu0 0.0
        %261 = vmatpush1.msra.mxu0 0.0
        %262 = vmatprep.subr.mxu0 0.0
        %263 = vmatpush1.msra.mxu0 0.0
        %264 = vmatprep.subr.mxu0 0.0
        %265 = vmatpush1.msra.mxu0 0.0
        %266 = vmatprep.subr.mxu0 0.0
        %267 = vmatpush1.msra.mxu0 0.0
        %268 = vmatprep.subr.mxu0 0.0
        %269 = vmatpush1.msra.mxu0 0.0
        %270 = vmatprep.subr.mxu0 0.0
        %271 = vmatpush1.msra.mxu0 0.0
        %272 = vmatprep.subr.mxu0 0.0
        %273 = vmatpush1.msra.mxu0 0.0
        %274 = vmatprep.subr.mxu0 0.0
        %275 = vmatpush1.msra.mxu0 0.0
        %276 = vmatprep.subr.mxu0 0.0
        %277 = vmatpush1.msra.mxu0 0.0
        %278 = vmatprep.subr.mxu0 0.0
        %279 = vmatpush1.msra.mxu0 0.0
        %280 = vmatprep.subr.mxu0 0.0
        %281 = vmatpush1.msra.mxu0 0.0
        %282 = vmatprep.subr.mxu0 0.0
        %283 = vmatpush1.msra.mxu0 0.0
        %284 = vmatprep.subr.mxu0 0.0
        %285 = vmatpush1.msra.mxu0 0.0
        %286 = vmatprep.subr.mxu0 0.0
        %287 = vmatpush1.msra.mxu0 0.0
        %288 = vmatprep.subr.mxu0 0.0
        %289 = vmatpush1.msra.mxu0 0.0
        %290 = vmatprep.subr.mxu0 0.0
        %291 = vmatpush1.msra.mxu0 0.0
        %292 = vmatprep.subr.mxu0 0.0
        %293 = vmatpush1.msra.mxu0 0.0
        %294 = vmatprep.subr.mxu0 0.0
        %295 = vmatpush1.msra.mxu0 0.0
        %296 = vmatprep.subr.mxu0 0.0
        %297 = vmatpush1.msra.mxu0 0.0
        %298 = vmatprep.subr.mxu0 0.0
        %299 = vmatpush1.msra.mxu0 0.0
        %300 = vmatprep.subr.mxu0 0.0
        %301 = vmatpush1.msra.mxu0 0.0
        %302 = vmatprep.subr.mxu0 0.0
        %303 = vmatpush1.msra.mxu0 0.0
        %304 = vmatprep.subr.mxu0 0.0
        %305 = vmatpush1.msra.mxu0 0.0
        %306 = vmatprep.subr.mxu0 0.0
        %307 = vmatpush1.msra.mxu0 0.0
        %308 = vmatprep.subr.mxu0 0.0
        %309 = vmatpush1.msra.mxu0 0.0
        %310 = vmatprep.subr.mxu0 0.0
        %311 = vmatpush1.msra.mxu0 0.0
        %312 = vmatprep.mubr.f32.mxu0 0.0
        %313 = vmatmul.mubr.f32.gmra.mrb[0].mxu0 %v246
        %v314 = vpop.f32.mrb[0].mxu0
        %v315 = vadd.f32 %v243, %v314
        %v316 = vpop.f32.mrb[0].mxu0
        %317 = vdwg.mxu0
        %318 = vst.msk [vmem:[%s217] sm:$0xff] %vm219, %v315
        %320 = vrot.lane.b32.xlu0 %v315, 96
        %v321 = vpop.permute.xlu0 %320
        %s323 = scalar_lea.vmem %s217, 8 [#allocation7]
        %324 = vst.msk [vmem:[%s323] sm:$0xff] %vm219, %v321
        %325 = vrot.lane.b32.xlu0 %v315, 64
        %v326 = vpop.permute.xlu0 %325
        %s328 = scalar_lea.vmem %s217, 16 [#allocation7]
        %329 = vst.msk [vmem:[%s328] sm:$0xff] %vm219, %v326
        %s330 = sand.u32 %s113, 1
        %s331 = scalar_lea.sflag [#allocation4], %s330
        %s332 = sand.u32 %s113, 1
        %s333 = smul.addr %s332, 24
        %s334 = scalar_lea.vmem [#allocation7], %s333
        // Predicated region
        $region41: #{tpu_custom_call.1} parent=31 // pred_check
          %p335 = pneg %p123
        $region42: #{tpu_custom_call.1} parent=31 // pred_check_branch
          %337 = sbr.rel (%p335) target = $region44
        $region43: #{tpu_custom_call.1} parent=31 // pred_region
          %s339 = ssub.s32 384, 384
          %340 = vsyncadd %s331, %s339
          %s341 = sadd.s32 %s26, %s25
          %s342 = smul.addr %s341, 128
          %s343 = scalar_lea.hbm %s3, %s342
          %s344 = sshll.u32 %s334, 4
          %s345 = int_to_ptr.vmem [resolvable:$true] %s344
          %350 = dma.vmem_to_hbm [thread:$0]  %s345, 384, %s343, %s331, 128, 256, 8
        $region44: #{tpu_custom_call.1} parent=31 // pred_fallthru
          _
      $region32: #{tpu_custom_call.1} parent=5 // pred_fallthru
        _
      %p351 = scmp.le.s32.totalorder 2, %s16
      // Predicated region
      $region45: #{tpu_custom_call.1} parent=5 // pred_check
        %p352 = pneg %p351
      $region46: #{tpu_custom_call.1} parent=5 // pred_check_branch
        %354 = sbr.rel (%p352) target = $region48
      $region47: #{tpu_custom_call.1} parent=5 // pred_region
        %s355 = ssub.s32 %s16, 2
        // Predicated region
        $region49: #{tpu_custom_call.1} parent=47 // pred_check
          %p356 = pneg %p129
        $region50: #{tpu_custom_call.1} parent=47 // pred_check_branch
          %358 = sbr.rel (%p356) target = $region52
        $region51: #{tpu_custom_call.1} parent=47 // pred_region
          %s359 = sand.u32 %s114, 1
          %s360 = scalar_lea.sflag [#allocation4], %s359
          %s361 = sand.u32 %s114, 1
          %s362 = smul.addr %s361, 24
          %s363 = scalar_lea.vmem [#allocation7], %s362
          %364 = dma.done %s360, 384
        $region52: #{tpu_custom_call.1} parent=47 // pred_fallthru
          _
      $region48: #{tpu_custom_call.1} parent=5 // pred_fallthru
        _
    $region6: #{tpu_custom_call.1} parent=1 // loop_footer
      %s20 = sadd.s32 1, %s16
    $region7: #{tpu_custom_call.1} parent=1 // loop_footer_branch
      %15 = sbr.rel target = $region3
    $region8: #{tpu_custom_call.1} parent=1 // loop_exit
      _
    %365 = vsyncpa [#allocation3], 1
    %s366 = scalar_lea.sflag [#allocation3], 1
    %367 = vsyncpa %s366, 1
    %368 = vsyncpa [#allocation6], 1
    %369 = vsyncpa [#allocation4], 1
    %s370 = scalar_lea.sflag [#allocation4], 1
    %371 = vsyncpa %s370, 1

// kernel: tpu_custom_call.1
$region0: #{tpu_custom_call.1}
  #allocation0 [shape = 'u32[]', space=smem, size = 0x4, offset = 0x4, fixed_abs, tag = 'smem constant byte address 0x4 - core index']
  #allocation1 [shape = 'u32[144,128]{1,0:T(1,128)}', space=vmem, size = 0x12000, scoped, tag = 'internal scratch']
  %s0 = inlined_call_operand.hbm [shape: f32[2,8,32], index: 0, kind: input, shape index: {}]
  %s1 = inlined_call_operand.hbm [shape: f32[32,96], index: 1, kind: input, shape index: {}]
  %s2 = inlined_call_operand.vmem [shape: f32[1,96], index: 2, kind: input, shape index: {}]
  %s3 = inlined_call_operand.hbm [shape: f32[3,2,8,32], index: 3, kind: output, shape index: {}]
  %s4 = sld [smem:[#allocation0]]
  $region53: #{tpu_custom_call.1} parent=0
    _
  %s6 = ssub.s32 1, %s4
  %s7 = scalar_select 0, %s6, %s4
  $region1: #{tpu_custom_call.1} parent=0
    #allocation2 [shape = 'u8[8192]{0}', space=vmem, size = 0x2000, scoped, tag = 'input window, operand 0']
    #allocation3 [shape = 's32[2]{0}', space=sflag, size = 0x8, scoped, tag = 'scoped memory for tpu_custom_call.1']
    #allocation4 [shape = 's32[2]{0}', space=sflag, size = 0x8, scoped, tag = 'scoped memory for tpu_custom_call.1']
    #allocation5 [shape = 'u8[16384]{0}', space=vmem, size = 0x4000, scoped, tag = 'input window, operand 1, single buffered']
    #allocation6 [shape = 's32[1]{0}', space=sflag, size = 0x4, scoped, tag = 'scoped memory for tpu_custom_call.1']
    #allocation7 [shape = 'u8[24576]{0}', space=vmem, size = 0x6000, scoped, tag = 'output window, operand 0']
    %8 = vsyncpa [#allocation3], 0
    %s9 = scalar_lea.sflag [#allocation3], 1
    %10 = vsyncpa %s9, 0
    %11 = vsyncpa [#allocation6], 0
    %12 = vsyncpa [#allocation4], 0
    %s13 = scalar_lea.sflag [#allocation4], 1
    %14 = vsyncpa %s13, 0
    loop: start=0, step=1, limit=4
    $region2: #{tpu_custom_call.1} parent=1 // loop_pre_header
      _
    $region3: #{tpu_custom_call.1} parent=1 // loop_header
      %s16 = sphi 0, %s20
      %p17 = scmp.ge.s32.totalorder %s16, 4
      %s23 = sphi 0, %s35
      %s24 = sphi 0, %s31
      %s25 = sphi 0, %s23
      %s26 = sphi 0, %s24
      %s27 = sphi 0, %s25
      %s28 = sphi 0, %s26
      %s40 = sphi 0, %s42
      %s43 = sphi 0, %s40
      %s44 = sphi 0, %s43
      %s60 = sphi 0, %s44
      %s64 = sphi 0, %s64
      %s66 = sphi 0, %s64
      %s67 = sphi 0, %s66
      %s81 = sphi 0, %s67
      %s85 = sphi 0, %s85
      %s87 = sphi 0, %s85
      %s88 = sphi 0, %s87
      %s102 = sphi 0, %s88
      %s110 = sphi 0, %s112
      %s113 = sphi 0, %s110
      %s114 = sphi 0, %s113
      %s130 = sphi 0, %s114
    $region4: #{tpu_custom_call.1} parent=1 // loop_header_branch
      %19 = sbr.rel (%p17) target = $region8
    $region5: #{tpu_custom_call.1} parent=1 // loop_body
      %s21 = ssub.s32 %s16, 1
      %s22 = ssub.s32 %s16, 2
      %s29 = sadd.s32 1, %s24
      %p30 = scmp.ge.s32.totalorder %s29, 1
      %s31 = scalar_select %p30, 0, %s29
      %s32 = sadd.s32 1, %s23
      %s33 = scalar_select %p30, %s32, %s23
      %p34 = scmp.ge.s32.totalorder %s33, 2
      %s35 = scalar_select %p34, 0, %s33
      %s36 = ssub.s32 %s23, %s35
      %s37 = ssub.s32 %s24, %s31
      %s38 = sor.u32 %s36, %s37
      %p39 = scmp.eq.s32.totalorder %s38, 0
      %s41 = sadd.s32 %s40, 1
      %s42 = scalar_select %p39, %s40, %s41
      %p45 = pneg %p39
      %p46 = scmp.eq.s32.totalorder %s16, 1
      %p47 = por %p45, %p46
      %p48 = scmp.ne.s32.totalorder %s40, %s43
      %p49 = scmp.eq.s32.totalorder %s16, 0
      %p50 = por %p48, %p49
      %p51 = scmp.ne.s32.totalorder %s40, %s43
      %p52 = scmp.eq.s32.totalorder %s21, 1
      %p53 = por %p51, %p52
      %p54 = scmp.ne.s32.totalorder %s43, %s44
      %p55 = scmp.eq.s32.totalorder %s21, 0
      %p56 = por %p54, %p55
      %p57 = scmp.ne.s32.totalorder %s43, %s44
      %p58 = scmp.eq.s32.totalorder %s22, 1
      %p59 = por %p57, %p58
      %p61 = scmp.ne.s32.totalorder %s44, %s60
      %p62 = scmp.eq.s32.totalorder %s22, 0
      %p63 = por %p61, %p62
      %s65 = sadd.s32 %s64, 1
      %p68 = scmp.eq.s32.totalorder %s16, 1
      %p69 = scmp.ne.s32.totalorder %s64, %s66
      %p70 = scmp.eq.s32.totalorder %s16, 0
      %p71 = por %p69, %p70
      %p72 = scmp.ne.s32.totalorder %s64, %s66
      %p73 = scmp.eq.s32.totalorder %s21, 1
      %p74 = por %p72, %p73
      %p75 = scmp.ne.s32.totalorder %s66, %s67
      %p76 = scmp.eq.s32.totalorder %s21, 0
      %p77 = por %p75, %p76
      %p78 = scmp.ne.s32.totalorder %s66, %s67
      %p79 = scmp.eq.s32.totalorder %s22, 1
      %p80 = por %p78, %p79
      %p82 = scmp.ne.s32.totalorder %s67, %s81
      %p83 = scmp.eq.s32.totalorder %s22, 0
      %p84 = por %p82, %p83
      %s86 = sadd.s32 %s85, 1
      %p89 = scmp.eq.s32.totalorder %s16, 1
      %p90 = scmp.ne.s32.totalorder %s85, %s87
      %p91 = scmp.eq.s32.totalorder %s16, 0
      %p92 = por %p90, %p91
      %p93 = scmp.ne.s32.totalorder %s85, %s87
      %p94 = scmp.eq.s32.totalorder %s21, 1
      %p95 = por %p93, %p94
      %p96 = scmp.ne.s32.totalorder %s87, %s88
      %p97 = scmp.eq.s32.totalorder %s21, 0
      %p98 = por %p96, %p97
      %p99 = scmp.ne.s32.totalorder %s87, %s88
      %p100 = scmp.eq.s32.totalorder %s22, 1
      %p101 = por %p99, %p100
      %p103 = scmp.ne.s32.totalorder %s88, %s102
      %p104 = scmp.eq.s32.totalorder %s22, 0
      %p105 = por %p103, %p104
      %s106 = ssub.s32 %s23, %s35
      %s107 = ssub.s32 %s24, %s31
      %s108 = sor.u32 %s106, %s107
      %p109 = scmp.eq.s32.totalorder %s108, 0
      %s111 = sadd.s32 %s110, 1
      %s112 = scalar_select %p109, %s110, %s111
      %p115 = pneg %p109
      %p116 = scmp.eq.s32.totalorder %s16, 1
      %p117 = por %p115, %p116
      %p118 = scmp.ne.s32.totalorder %s110, %s113
      %p119 = scmp.eq.s32.totalorder %s16, 0
      %p120 = por %p118, %p119
      %p121 = scmp.ne.s32.totalorder %s110, %s113
      %p122 = scmp.eq.s32.totalorder %s21, 1
      %p123 = por %p121, %p122
      %p124 = scmp.ne.s32.totalorder %s113, %s114
      %p125 = scmp.eq.s32.totalorder %s21, 0
      %p126 = por %p124, %p125
      %p127 = scmp.ne.s32.totalorder %s113, %s114
      %p128 = scmp.eq.s32.totalorder %s22, 1
      %p129 = por %p127, %p128
      %p131 = scmp.ne.s32.totalorder %s114, %s130
      %p132 = scmp.eq.s32.totalorder %s22, 0
      %p133 = por %p131, %p132
      %p134 = scmp.le.s32.totalorder 1, %s16
      %p135 = scmp.lt.s32.totalorder %s16, 3
      %p136 = pnand %p134, %p135
      %p137 = pneg %p136
      // Predicated region
      $region9: #{tpu_custom_call.1} parent=5 // pred_check
        _
      $region10: #{tpu_custom_call.1} parent=5 // pred_check_branch
        %139 = sbr.rel (%p136) target = $region12
      $region11: #{tpu_custom_call.1} parent=5 // pred_region
        %s140 = ssub.s32 %s16, 1
        // Predicated region
        $region13: #{tpu_custom_call.1} parent=11 // pred_check
          %p141 = pneg %p77
        $region14: #{tpu_custom_call.1} parent=11 // pred_check_branch
          %143 = sbr.rel (%p141) target = $region16
        $region15: #{tpu_custom_call.1} parent=11 // pred_region
          %s145 = ssub.s32 512, 512
          %146 = vsyncadd [#allocation6], %s145
          %s147 = sshll.u32 [#allocation5], 4
          %s148 = int_to_ptr.vmem [resolvable:$true] %s147
          %153 = dma.hbm_to_vmem [thread:$0]  %s1, 512, %s148, [#allocation6], 128, 128, 8
        $region16: #{tpu_custom_call.1} parent=11 // pred_fallthru
          _
        // Predicated region
        $region17: #{tpu_custom_call.1} parent=11 // pred_check
          %p154 = pneg %p98
        $region18: #{tpu_custom_call.1} parent=11 // pred_check_branch
          %156 = sbr.rel (%p154) target = $region20
        $region19: #{tpu_custom_call.1} parent=11 // pred_region
          _
        $region20: #{tpu_custom_call.1} parent=11 // pred_fallthru
          _
      $region12: #{tpu_custom_call.1} parent=5 // pred_fallthru
        _
      %p157 = scmp.lt.s32.totalorder %s16, 2
      // Predicated region
      $region21: #{tpu_custom_call.1} parent=5 // pred_check
        %p158 = pneg %p157
      $region22: #{tpu_custom_call.1} parent=5 // pred_check_branch
        %160 = sbr.rel (%p158) target = $region24
      $region23: #{tpu_custom_call.1} parent=5 // pred_region
        // Predicated region
        $region25: #{tpu_custom_call.1} parent=23 // pred_check
          %p161 = pneg %p50
        $region26: #{tpu_custom_call.1} parent=23 // pred_check_branch
          %163 = sbr.rel (%p161) target = $region28
        $region27: #{tpu_custom_call.1} parent=23 // pred_region
          %s164 = sand.u32 %s40, 1
          %s165 = scalar_lea.sflag [#allocation3], %s164
          %s166 = sand.u32 %s40, 1
          %s167 = smul.addr %s166, 8
          %s168 = scalar_lea.vmem [#allocation2], %s167
          %s170 = ssub.s32 128, 128
          %171 = vsyncadd %s165, %s170
          %s172 = sadd.s32 %s24, %s23
          %s173 = smul.addr %s172, 128
          %s174 = scalar_lea.hbm %s0, %s173
          %s176 = sshll.u32 %s168, 4
          %s177 = int_to_ptr.vmem [resolvable:$true] %s176
          %179 = dma.hbm_to_vmem [thread:$0]  %s174, 128, %s177, %s165
        $region28: #{tpu_custom_call.1} parent=23 // pred_fallthru
          _
      $region24: #{tpu_custom_call.1} parent=5 // pred_fallthru
        _
      %p180 = scmp.le.s32.totalorder 1, %s16
      %p181 = scmp.lt.s32.totalorder %s16, 3
      %p182 = pnand %p180, %p181
      %p183 = pneg %p182
      // Predicated region
      $region29: #{tpu_custom_call.1} parent=5 // pred_check
        _
      $region30: #{tpu_custom_call.1} parent=5 // pred_check_branch
        %185 = sbr.rel (%p182) target = $region32
      $region31: #{tpu_custom_call.1} parent=5 // pred_region
        %s186 = ssub.s32 %s16, 1
        %s187 = sand.u32 %s43, 1
        %s188 = scalar_lea.sflag [#allocation3], %s187
        %s189 = sand.u32 %s43, 1
        %s190 = smul.addr %s189, 8
        %s191 = scalar_lea.vmem [#allocation2], %s190
        // Predicated region
        $region33: #{tpu_custom_call.1} parent=31 // pred_check
          %p192 = pneg %p56
        $region34: #{tpu_custom_call.1} parent=31 // pred_check_branch
          %194 = sbr.rel (%p192) target = $region36
        $region35: #{tpu_custom_call.1} parent=31 // pred_region
          %195 = dma.done %s188, 128
        $region36: #{tpu_custom_call.1} parent=31 // pred_fallthru
          _
        // Predicated region
        $region37: #{tpu_custom_call.1} parent=31 // pred_check
          %p196 = pneg %p77
        $region38: #{tpu_custom_call.1} parent=31 // pred_check_branch
          %198 = sbr.rel (%p196) target = $region40
        $region39: #{tpu_custom_call.1} parent=31 // pred_region
          %199 = dma.done [#allocation6], 512
        $region40: #{tpu_custom_call.1} parent=31 // pred_fallthru
          _
        %s200 = sand.u32 %s43, 1
        %s201 = scalar_lea.sflag [#allocation3], %s200
        %s202 = sand.u32 %s43, 1
        %s203 = smul.addr %s202, 8
        %s204 = scalar_lea.vmem [#allocation2], %s203
        %p205 = pneg %p56
        %p206 = pneg %p53
        %p207 = pneg %p77
        %p208 = pneg %p74
        %p209 = pneg %p98
        %p210 = pneg %p95
        %p211 = pneg %p126
        %p212 = pneg %p123
        %s213 = sand.u32 %s113, 1
        %s214 = scalar_lea.sflag [#allocation4], %s213
        %s215 = sand.u32 %s113, 1
        %s216 = smul.addr %s215, 24
        %s217 = scalar_lea.vmem [#allocation7], %s216
        %v218 = vld [vmem:[%s191] sm:$0xff]
        %vm219 = vcmask 261120
        %v220 = vsel %vm219, %v218, 0.0
        %221 = vadd.xlane.f32.xlu0 %v220
        %v222 = vpop.xlane.xlu0 %221
        %v223 = vrcp.pop 32.0
        %v224 = vmul.f32 %v222, %v223
        %v225 = vsub.f32 %v218, %v224
        %v226 = vmul.f32 %v225, %v225
        %v227 = vsel %vm219, %v226, 0.0
        %228 = vadd.xlane.f32.xlu0 %v227
        %v229 = vpop.xlane.xlu0 %228
        %v230 = vmul.f32 %v229, %v223
        %v231 = vadd.f32 %v230, 1e-05
        %v232 = vrsqrt.pop %v231
        %v233 = vmul.f32 %v225, %v232
        %v234 = vld [vmem:[#allocation5] sm:$0xff]
        %v235 = vld [vmem:[#allocation5 + $0x8] sm:$0xff]
        %v236 = vld [vmem:[#allocation5 + $0x10] sm:$0xff]
        %v237 = vld [vmem:[#allocation5 + $0x18] sm:$0xff]
        %v238 = vld [vmem:[%s2] sm:$0x1]
        %v240 = vlaneseq
        %v241 = vshrl.u32 %v240, 7
        %v242 = vsub.s32 0, %v241
        %v243 = vrot.slane %v238, %v242
        %v246 = vsel %vm219, %v233, 0
        %248 = vmatprep.subr.mxu0 0.0
        %249 = vmatpush1.msra.mxu0 %v234
        %250 = vmatprep.subr.mxu0 0.0
        %251 = vmatpush1.msra.mxu0 %v235
        %252 = vmatprep.subr.mxu0 0.0
        %253 = vmatpush1.msra.mxu0 %v236
        %254 = vmatprep.subr.mxu0 0.0
        %255 = vmatpush1.msra.mxu0 %v237
        %256 = vmatprep.subr.mxu0 0.0
        %257 = vmatpush1.msra.mxu0 0.0
        %258 = vmatprep.subr.mxu0 0.0
        %259 = vmatpush1.msra.mxu0 0.0
        %260 = vmatprep.subr.mxu0 0.0
        %261 = vmatpush1.msra.mxu0 0.0
        %262 = vmatprep.subr.mxu0 0.0
        %263 = vmatpush1.msra.mxu0 0.0
        %264 = vmatprep.subr.mxu0 0.0
        %265 = vmatpush1.msra.mxu0 0.0
        %266 = vmatprep.subr.mxu0 0.0
        %267 = vmatpush1.msra.mxu0 0.0
        %268 = vmatprep.subr.mxu0 0.0
        %269 = vmatpush1.msra.mxu0 0.0
        %270 = vmatprep.subr.mxu0 0.0
        %271 = vmatpush1.msra.mxu0 0.0
        %272 = vmatprep.subr.mxu0 0.0
        %273 = vmatpush1.msra.mxu0 0.0
        %274 = vmatprep.subr.mxu0 0.0
        %275 = vmatpush1.msra.mxu0 0.0
        %276 = vmatprep.subr.mxu0 0.0
        %277 = vmatpush1.msra.mxu0 0.0
        %278 = vmatprep.subr.mxu0 0.0
        %279 = vmatpush1.msra.mxu0 0.0
        %280 = vmatprep.subr.mxu0 0.0
        %281 = vmatpush1.msra.mxu0 0.0
        %282 = vmatprep.subr.mxu0 0.0
        %283 = vmatpush1.msra.mxu0 0.0
        %284 = vmatprep.subr.mxu0 0.0
        %285 = vmatpush1.msra.mxu0 0.0
        %286 = vmatprep.subr.mxu0 0.0
        %287 = vmatpush1.msra.mxu0 0.0
        %288 = vmatprep.subr.mxu0 0.0
        %289 = vmatpush1.msra.mxu0 0.0
        %290 = vmatprep.subr.mxu0 0.0
        %291 = vmatpush1.msra.mxu0 0.0
        %292 = vmatprep.subr.mxu0 0.0
        %293 = vmatpush1.msra.mxu0 0.0
        %294 = vmatprep.subr.mxu0 0.0
        %295 = vmatpush1.msra.mxu0 0.0
        %296 = vmatprep.subr.mxu0 0.0
        %297 = vmatpush1.msra.mxu0 0.0
        %298 = vmatprep.subr.mxu0 0.0
        %299 = vmatpush1.msra.mxu0 0.0
        %300 = vmatprep.subr.mxu0 0.0
        %301 = vmatpush1.msra.mxu0 0.0
        %302 = vmatprep.subr.mxu0 0.0
        %303 = vmatpush1.msra.mxu0 0.0
        %304 = vmatprep.subr.mxu0 0.0
        %305 = vmatpush1.msra.mxu0 0.0
        %306 = vmatprep.subr.mxu0 0.0
        %307 = vmatpush1.msra.mxu0 0.0
        %308 = vmatprep.subr.mxu0 0.0
        %309 = vmatpush1.msra.mxu0 0.0
        %310 = vmatprep.subr.mxu0 0.0
        %311 = vmatpush1.msra.mxu0 0.0
        %312 = vmatprep.mubr.f32.mxu0 0.0
        %313 = vmatmul.mubr.f32.gmra.mrb[0].mxu0 %v246
        %v314 = vpop.f32.mrb[0].mxu0
        %v315 = vadd.f32 %v243, %v314
        %v316 = vpop.f32.mrb[0].mxu0
        %317 = vdwg.mxu0
        %318 = vst.msk [vmem:[%s217] sm:$0xff] %vm219, %v315
        %320 = vrot.lane.b32.xlu0 %v315, 96
        %v321 = vpop.permute.xlu0 %320
        %s323 = scalar_lea.vmem %s217, 8 [#allocation7]
        %324 = vst.msk [vmem:[%s323] sm:$0xff] %vm219, %v321
        %325 = vrot.lane.b32.xlu0 %v315, 64
        %v326 = vpop.permute.xlu0 %325
        %s328 = scalar_lea.vmem %s217, 16 [#allocation7]
        %329 = vst.msk [vmem:[%s328] sm:$0xff] %vm219, %v326
        %s330 = sand.u32 %s113, 1
        %s331 = scalar_lea.sflag [#allocation4], %s330
        %s332 = sand.u32 %s113, 1
        %s333 = smul.addr %s332, 24
        %s334 = scalar_lea.vmem [#allocation7], %s333
        // Predicated region
        $region41: #{tpu_custom_call.1} parent=31 // pred_check
          %p335 = pneg %p123
        $region42: #{tpu_custom_call.1} parent=31 // pred_check_branch
          %337 = sbr.rel (%p335) target = $region44
        $region43: #{tpu_custom_call.1} parent=31 // pred_region
          %s339 = ssub.s32 384, 384
          %340 = vsyncadd %s331, %s339
          %s341 = sadd.s32 %s26, %s25
          %s342 = smul.addr %s341, 128
          %s343 = scalar_lea.hbm %s3, %s342
          %s344 = sshll.u32 %s334, 4
          %s345 = int_to_ptr.vmem [resolvable:$true] %s344
          %350 = dma.vmem_to_hbm [thread:$0]  %s345, 384, %s343, %s331, 128, 256, 8
        $region44: #{tpu_custom_call.1} parent=31 // pred_fallthru
          _
      $region32: #{tpu_custom_call.1} parent=5 // pred_fallthru
        _
      %p351 = scmp.le.s32.totalorder 2, %s16
      // Predicated region
      $region45: #{tpu_custom_call.1} parent=5 // pred_check
        %p352 = pneg %p351
      $region46: #{tpu_custom_call.1} parent=5 // pred_check_branch
        %354 = sbr.rel (%p352) target = $region48
      $region47: #{tpu_custom_call.1} parent=5 // pred_region
        %s355 = ssub.s32 %s16, 2
        // Predicated region
        $region49: #{tpu_custom_call.1} parent=47 // pred_check
          %p356 = pneg %p129
        $region50: #{tpu_custom_call.1} parent=47 // pred_check_branch
          %358 = sbr.rel (%p356) target = $region52
        $region51: #{tpu_custom_call.1} parent=47 // pred_region
          %s359 = sand.u32 %s114, 1
          %s360 = scalar_lea.sflag [#allocation4], %s359
          %s361 = sand.u32 %s114, 1
          %s362 = smul.addr %s361, 24
          %s363 = scalar_lea.vmem [#allocation7], %s362
          %364 = dma.done %s360, 384
        $region52: #{tpu_custom_call.1} parent=47 // pred_fallthru
          _
      $region48: #{tpu_custom_call.1} parent=5 // pred_fallthru
        _
    $region6: #{tpu_custom_call.1} parent=1 // loop_footer
      %s20 = sadd.s32 1, %s16
    $region7: #{tpu_custom_call.1} parent=1 // loop_footer_branch
      %15 = sbr.rel target = $region3
    $region8: #{tpu_custom_call.1} parent=1 // loop_exit
      _
    %365 = vsyncpa [#allocation3], 1
    %s366 = scalar_lea.sflag [#allocation3], 1
    %367 = vsyncpa %s366, 1
    %368 = vsyncpa [#allocation6], 1
    %369 = vsyncpa [#allocation4], 1
    %s370 = scalar_lea.sflag [#allocation4], 1
    %371 = vsyncpa %s370, 1

</llo_original>
